<compile_context>
chip_gen: v6e
topology: v6e:2x2x1
jax: 0.10.0
libtpu: 0.0.40
codegen_flags: <defaults>
</compile_context>

<pallas_src>
import jax
import jax.numpy as jnp
from jax.experimental import pallas as pl
from jax.experimental.pallas import tpu as pltpu


def _round_up(x, m):
    return ((x + m - 1) // m) * m


# -----------------------------------------------------------------------------
# Fused forward kernel (single grid point; 4 packed VMEM inputs, 1 output).
# -----------------------------------------------------------------------------
def _make_gcn_kernel(n_pad, g_pad):
    def kernel(ap_ref, x_ref, w_ref, b_ref, o_ref):
        # ap_ref packs [Ahat (n_pad rows) ; mean-pool matrix (g_pad rows)], f32.
        adj = ap_ref[0:n_pad, :]                       # [n_pad, n_pad]
        pool = ap_ref[n_pad:n_pad + g_pad, :]          # [g_pad, n_pad]

        h = x_ref[...]                                 # [n_pad, 128] f32 (zero-padded cols)

        # 5 x GCNConv(+ReLU), PyG order: relu(Ahat @ (X @ W_i) + b_i)
        for i in range(5):
            xw = jnp.dot(h, w_ref[i], preferred_element_type=jnp.float32)
            h = jnp.maximum(
                jnp.dot(adj, xw, preferred_element_type=jnp.float32)
                + b_ref[i:i + 1, :], 0.0)

        # global_mean_pool as a matmul: pooled = P @ H
        g = jnp.dot(pool, h, preferred_element_type=jnp.float32)

        # fc1 + ReLU
        g = jnp.maximum(
            jnp.dot(g, w_ref[5], preferred_element_type=jnp.float32)
            + b_ref[5:6, :], 0.0)

        # F.dropout(p=0.5, training=False) -> identity at inference.
        # TODO(synk): training-mode dropout would use pltpu.prng_seed/prng_random_bits.

        # fc2 -> only HBM store of the kernel (lane-dense [g_pad, 128] slab).
        o_ref[...] = (jnp.dot(g, w_ref[6], preferred_element_type=jnp.float32)
                      + b_ref[6:7, :])
    return kernel


# -----------------------------------------------------------------------------
# Graph preprocessing (PyG gcn_norm + mean-pool matrix), hoisted out of the
# per-call path.  All float32.
# -----------------------------------------------------------------------------
def gcn_norm_dense(edge_index, num_nodes, edge_weight=None):
    """Dense Ahat = D^{-1/2} (A + remaining self loops) D^{-1/2}; Ahat[target, source]."""
    row, col = edge_index[0], edge_index[1]          # row = source, col = target
    if edge_weight is None:
        edge_weight = jnp.ones(row.shape[0], dtype=jnp.float32)
    a = jnp.zeros((num_nodes, num_nodes), dtype=jnp.float32)
    a = a.at[col, row].add(edge_weight)
    # add_remaining_self_loops: only add a unit self-loop where none exists.
    diag = jnp.diagonal(a)
    a = a + jnp.diag(jnp.where(diag == 0.0, 1.0, 0.0))
    deg = a.sum(axis=1)
    dinv = jnp.where(deg > 0, jax.lax.rsqrt(deg), 0.0)
    return dinv[:, None] * a * dinv[None, :]


def build_pool_matrix(batch, num_graphs_padded, num_nodes):
    one_hot = (batch[None, :] == jnp.arange(num_graphs_padded)[:, None]).astype(jnp.float32)
    counts = one_hot.sum(axis=1, keepdims=True)
    return one_hot / jnp.maximum(counts, 1.0)


def build_graph_operands(edge_index, batch, num_nodes, num_graphs, edge_weight=None):
    """One packed [n_pad + g_pad, n_pad] f32 slab: Ahat rows then pool rows."""
    n_pad = _round_up(num_nodes, 8)
    g_pad = _round_up(max(num_graphs, 1), 8)
    adj = gcn_norm_dense(edge_index, num_nodes, edge_weight)
    adj = jnp.pad(adj, ((0, n_pad - num_nodes), (0, n_pad - num_nodes)))
    pool = build_pool_matrix(batch, g_pad, num_nodes)
    pool = jnp.pad(pool, ((0, 0), (0, n_pad - num_nodes)))
    return jnp.concatenate([adj, pool], axis=0)


# -----------------------------------------------------------------------------
# Parameters.
# -----------------------------------------------------------------------------
def init_params(key, in_channels, hidden_channels, out_channels):
    params = {}
    keys = jax.random.split(key, 9)
    dims = [(in_channels, hidden_channels)] + [(hidden_channels, hidden_channels)] * 4
    for i, (cin, cout) in enumerate(dims):
        # glorot-uniform weight, zero bias (GCNConv defaults)
        limit = jnp.sqrt(6.0 / (cin + cout))
        w = jax.random.uniform(keys[i], (cin, cout), jnp.float32, -limit, limit)
        params[f"conv{i + 1}"] = {"w": w, "b": jnp.zeros((1, cout), jnp.float32)}
    lim = 1.0 / jnp.sqrt(hidden_channels)
    params["fc1"] = {
        "w": jax.random.uniform(keys[5], (hidden_channels, hidden_channels),
                                jnp.float32, -lim, lim),
        "b": jax.random.uniform(keys[6], (1, hidden_channels), jnp.float32, -lim, lim),
    }
    params["fc2"] = {
        "w": jax.random.uniform(keys[7], (hidden_channels, out_channels),
                                jnp.float32, -lim, lim),
        "b": jax.random.uniform(keys[8], (1, out_channels), jnp.float32, -lim, lim),
    }
    return params


def pack_params(params, dpad):
    """Stack all 7 weights into [7, dpad, dpad] f32 and all biases into [7, dpad] f32."""
    def pad_w(w):
        r, c = w.shape
        return jnp.pad(w.astype(jnp.float32), ((0, dpad - r), (0, dpad - c)))

    def pad_b(b):
        b = b.reshape(-1).astype(jnp.float32)
        return jnp.pad(b, (0, dpad - b.shape[0]))

    names = [f"conv{i}" for i in range(1, 6)] + ["fc1", "fc2"]
    w_stack = jnp.stack([pad_w(params[n]["w"]) for n in names])
    b_stack = jnp.stack([pad_b(params[n]["b"]) for n in names])
    return w_stack, b_stack


# -----------------------------------------------------------------------------
# Forward: pad/pack operands, one fused pallas_call, slice padded output.
# -----------------------------------------------------------------------------
def gcn_forward(params, x, ap, num_graphs):
    n, in_c = x.shape
    n_pad = ap.shape[1]
    g_pad = ap.shape[0] - n_pad
    hidden = params["fc1"]["w"].shape[0]
    out_c = params["fc2"]["w"].shape[1]
    dpad = _round_up(max(in_c, hidden, out_c), 128)     # lane-dense channel dim

    w_stack, b_stack = pack_params(params, dpad)        # [7, dpad, dpad], [7, dpad]
    x_pad = jnp.pad(x.astype(jnp.float32), ((0, n_pad - n), (0, dpad - in_c)))

    vmem = pl.BlockSpec(memory_space=pltpu.MemorySpace.VMEM)
    out_padded = pl.pallas_call(
        _make_gcn_kernel(n_pad, g_pad),
        out_shape=jax.ShapeDtypeStruct((g_pad, dpad), jnp.float32),
        in_specs=[vmem, vmem, vmem, vmem],
        out_specs=vmem,
    )(ap, x_pad, w_stack, b_stack)

    return out_padded[:num_graphs, :out_c]


# -----------------------------------------------------------------------------
if __name__ == "__main__":
    in_channels, hidden_channels, out_channels = 8, 32, 4
    num_nodes, num_graphs = 16, 2

    key = jax.random.PRNGKey(0)
    k_x, k_p = jax.random.split(key)

    # node features
    x = jax.random.normal(k_x, (num_nodes, in_channels), dtype=jnp.float32)

    # two ring graphs of 8 nodes each (edges in both directions)
    src, dst = [], []
    for g in range(num_graphs):
        base = g * 8
        for i in range(8):
            a, b = base + i, base + (i + 1) % 8
            src += [a, b]
            dst += [b, a]
    edge_index = jnp.array([src, dst], dtype=jnp.int32)
    batch = jnp.repeat(jnp.arange(num_graphs, dtype=jnp.int32), 8)

    params = init_params(k_p, in_channels, hidden_channels, out_channels)

    # Graph operands built ONCE (reused across forward calls) per the perf review.
    ap = jax.block_until_ready(
        build_graph_operands(edge_index, batch, num_nodes, num_graphs))

    fwd = jax.jit(gcn_forward, static_argnames=("num_graphs",))
    out = fwd(params, x, ap, num_graphs=num_graphs)
    out = jax.block_until_ready(out)
    assert out.shape == (num_graphs, out_channels)
    assert bool(jnp.all(jnp.isfinite(out)))
    print("KERNEL_OK")
</pallas_src>

<mosaic_0001>
module attributes {stable_mosaic.version = 11 : i64} {
  func.func @kernel(%arg0: memref<24x16xf32, #tpu.memory_space<vmem>>, %arg1: memref<16x128xf32, #tpu.memory_space<vmem>>, %arg2: memref<7x128x128xf32, #tpu.memory_space<vmem>>, %arg3: memref<7x128xf32, #tpu.memory_space<vmem>>, %arg4: memref<8x128xf32, #tpu.memory_space<vmem>>) attributes {dimension_semantics = [], scalar_prefetch = 0 : i64, scratch_operands = 0 : i64, tpu.core_type = #tpu.core_type<tc>} {
    %c0 = arith.constant 0 : index
    %c0_0 = arith.constant 0 : index
    %0 = vector.load %arg0[%c0, %c0_0] : memref<24x16xf32, #tpu.memory_space<vmem>>, vector<16x16xf32>
    %c16 = arith.constant 16 : index
    %c0_1 = arith.constant 0 : index
    %1 = vector.load %arg0[%c16, %c0_1] : memref<24x16xf32, #tpu.memory_space<vmem>>, vector<8x16xf32>
    %c0_2 = arith.constant 0 : index
    %c0_3 = arith.constant 0 : index
    %2 = vector.load %arg1[%c0_2, %c0_3] : memref<16x128xf32, #tpu.memory_space<vmem>>, vector<16x128xf32>
    %c0_4 = arith.constant 0 : index
    %c0_5 = arith.constant 0 : index
    %c0_6 = arith.constant 0 : index
    %3 = vector.load %arg2[%c0_4, %c0_5, %c0_6] : memref<7x128x128xf32, #tpu.memory_space<vmem>>, vector<1x128x128xf32>
    %4 = vector.shape_cast %3 : vector<1x128x128xf32> to vector<128x128xf32>
    %cst = arith.constant dense<0.000000e+00> : vector<16x128xf32>
    %5 = tpu.matmul %2, %4, %cst {dimension_numbers = #tpu.dot_dimension_numbers<[1], [0], [0], [1], [0, 0, 1, 1], [], []>} : vector<16x128xf32>, vector<128x128xf32>, vector<16x128xf32> -> vector<16x128xf32>
    %cst_7 = arith.constant dense<0.000000e+00> : vector<16x128xf32>
    %6 = tpu.matmul %0, %5, %cst_7 {dimension_numbers = #tpu.dot_dimension_numbers<[1], [0], [0], [1], [0, 0, 1, 1], [], []>} : vector<16x16xf32>, vector<16x128xf32>, vector<16x128xf32> -> vector<16x128xf32>
    %c0_8 = arith.constant 0 : index
    %c0_9 = arith.constant 0 : index
    %7 = vector.load %arg3[%c0_8, %c0_9] : memref<7x128xf32, #tpu.memory_space<vmem>>, vector<1x128xf32>
    %8 = vector.broadcast %7 : vector<1x128xf32> to vector<16x128xf32>
    %9 = arith.addf %6, %8 : vector<16x128xf32>
    %cst_10 = arith.constant 0.000000e+00 : f32
    %10 = vector.broadcast %cst_10 : f32 to vector<16x128xf32>
    %11 = arith.maximumf %9, %10 : vector<16x128xf32>
    %c1 = arith.constant 1 : index
    %c0_11 = arith.constant 0 : index
    %c0_12 = arith.constant 0 : index
    %12 = vector.load %arg2[%c1, %c0_11, %c0_12] : memref<7x128x128xf32, #tpu.memory_space<vmem>>, vector<1x128x128xf32>
    %13 = vector.shape_cast %12 : vector<1x128x128xf32> to vector<128x128xf32>
    %cst_13 = arith.constant dense<0.000000e+00> : vector<16x128xf32>
    %14 = tpu.matmul %11, %13, %cst_13 {dimension_numbers = #tpu.dot_dimension_numbers<[1], [0], [0], [1], [0, 0, 1, 1], [], []>} : vector<16x128xf32>, vector<128x128xf32>, vector<16x128xf32> -> vector<16x128xf32>
    %cst_14 = arith.constant dense<0.000000e+00> : vector<16x128xf32>
    %15 = tpu.matmul %0, %14, %cst_14 {dimension_numbers = #tpu.dot_dimension_numbers<[1], [0], [0], [1], [0, 0, 1, 1], [], []>} : vector<16x16xf32>, vector<16x128xf32>, vector<16x128xf32> -> vector<16x128xf32>
    %c1_15 = arith.constant 1 : index
    %c0_16 = arith.constant 0 : index
    %16 = vector.load %arg3[%c1_15, %c0_16] : memref<7x128xf32, #tpu.memory_space<vmem>>, vector<1x128xf32>
    %17 = vector.broadcast %16 : vector<1x128xf32> to vector<16x128xf32>
    %18 = arith.addf %15, %17 : vector<16x128xf32>
    %cst_17 = arith.constant 0.000000e+00 : f32
    %19 = vector.broadcast %cst_17 : f32 to vector<16x128xf32>
    %20 = arith.maximumf %18, %19 : vector<16x128xf32>
    %c2 = arith.constant 2 : index
    %c0_18 = arith.constant 0 : index
    %c0_19 = arith.constant 0 : index
    %21 = vector.load %arg2[%c2, %c0_18, %c0_19] : memref<7x128x128xf32, #tpu.memory_space<vmem>>, vector<1x128x128xf32>
    %22 = vector.shape_cast %21 : vector<1x128x128xf32> to vector<128x128xf32>
    %cst_20 = arith.constant dense<0.000000e+00> : vector<16x128xf32>
    %23 = tpu.matmul %20, %22, %cst_20 {dimension_numbers = #tpu.dot_dimension_numbers<[1], [0], [0], [1], [0, 0, 1, 1], [], []>} : vector<16x128xf32>, vector<128x128xf32>, vector<16x128xf32> -> vector<16x128xf32>
    %cst_21 = arith.constant dense<0.000000e+00> : vector<16x128xf32>
    %24 = tpu.matmul %0, %23, %cst_21 {dimension_numbers = #tpu.dot_dimension_numbers<[1], [0], [0], [1], [0, 0, 1, 1], [], []>} : vector<16x16xf32>, vector<16x128xf32>, vector<16x128xf32> -> vector<16x128xf32>
    %c2_22 = arith.constant 2 : index
    %c0_23 = arith.constant 0 : index
    %25 = vector.load %arg3[%c2_22, %c0_23] : memref<7x128xf32, #tpu.memory_space<vmem>>, vector<1x128xf32>
    %26 = vector.broadcast %25 : vector<1x128xf32> to vector<16x128xf32>
    %27 = arith.addf %24, %26 : vector<16x128xf32>
    %cst_24 = arith.constant 0.000000e+00 : f32
    %28 = vector.broadcast %cst_24 : f32 to vector<16x128xf32>
    %29 = arith.maximumf %27, %28 : vector<16x128xf32>
    %c3 = arith.constant 3 : index
    %c0_25 = arith.constant 0 : index
    %c0_26 = arith.constant 0 : index
    %30 = vector.load %arg2[%c3, %c0_25, %c0_26] : memref<7x128x128xf32, #tpu.memory_space<vmem>>, vector<1x128x128xf32>
    %31 = vector.shape_cast %30 : vector<1x128x128xf32> to vector<128x128xf32>
    %cst_27 = arith.constant dense<0.000000e+00> : vector<16x128xf32>
    %32 = tpu.matmul %29, %31, %cst_27 {dimension_numbers = #tpu.dot_dimension_numbers<[1], [0], [0], [1], [0, 0, 1, 1], [], []>} : vector<16x128xf32>, vector<128x128xf32>, vector<16x128xf32> -> vector<16x128xf32>
    %cst_28 = arith.constant dense<0.000000e+00> : vector<16x128xf32>
    %33 = tpu.matmul %0, %32, %cst_28 {dimension_numbers = #tpu.dot_dimension_numbers<[1], [0], [0], [1], [0, 0, 1, 1], [], []>} : vector<16x16xf32>, vector<16x128xf32>, vector<16x128xf32> -> vector<16x128xf32>
    %c3_29 = arith.constant 3 : index
    %c0_30 = arith.constant 0 : index
    %34 = vector.load %arg3[%c3_29, %c0_30] : memref<7x128xf32, #tpu.memory_space<vmem>>, vector<1x128xf32>
    %35 = vector.broadcast %34 : vector<1x128xf32> to vector<16x128xf32>
    %36 = arith.addf %33, %35 : vector<16x128xf32>
    %cst_31 = arith.constant 0.000000e+00 : f32
    %37 = vector.broadcast %cst_31 : f32 to vector<16x128xf32>
    %38 = arith.maximumf %36, %37 : vector<16x128xf32>
    %c4 = arith.constant 4 : index
    %c0_32 = arith.constant 0 : index
    %c0_33 = arith.constant 0 : index
    %39 = vector.load %arg2[%c4, %c0_32, %c0_33] : memref<7x128x128xf32, #tpu.memory_space<vmem>>, vector<1x128x128xf32>
    %40 = vector.shape_cast %39 : vector<1x128x128xf32> to vector<128x128xf32>
    %cst_34 = arith.constant dense<0.000000e+00> : vector<16x128xf32>
    %41 = tpu.matmul %38, %40, %cst_34 {dimension_numbers = #tpu.dot_dimension_numbers<[1], [0], [0], [1], [0, 0, 1, 1], [], []>} : vector<16x128xf32>, vector<128x128xf32>, vector<16x128xf32> -> vector<16x128xf32>
    %cst_35 = arith.constant dense<0.000000e+00> : vector<16x128xf32>
    %42 = tpu.matmul %0, %41, %cst_35 {dimension_numbers = #tpu.dot_dimension_numbers<[1], [0], [0], [1], [0, 0, 1, 1], [], []>} : vector<16x16xf32>, vector<16x128xf32>, vector<16x128xf32> -> vector<16x128xf32>
    %c4_36 = arith.constant 4 : index
    %c0_37 = arith.constant 0 : index
    %43 = vector.load %arg3[%c4_36, %c0_37] : memref<7x128xf32, #tpu.memory_space<vmem>>, vector<1x128xf32>
    %44 = vector.broadcast %43 : vector<1x128xf32> to vector<16x128xf32>
    %45 = arith.addf %42, %44 : vector<16x128xf32>
    %cst_38 = arith.constant 0.000000e+00 : f32
    %46 = vector.broadcast %cst_38 : f32 to vector<16x128xf32>
    %47 = arith.maximumf %45, %46 : vector<16x128xf32>
    %cst_39 = arith.constant dense<0.000000e+00> : vector<8x128xf32>
    %48 = tpu.matmul %1, %47, %cst_39 {dimension_numbers = #tpu.dot_dimension_numbers<[1], [0], [0], [1], [0, 0, 1, 1], [], []>} : vector<8x16xf32>, vector<16x128xf32>, vector<8x128xf32> -> vector<8x128xf32>
    %c5 = arith.constant 5 : index
    %c0_40 = arith.constant 0 : index
    %c0_41 = arith.constant 0 : index
    %49 = vector.load %arg2[%c5, %c0_40, %c0_41] : memref<7x128x128xf32, #tpu.memory_space<vmem>>, vector<1x128x128xf32>
    %50 = vector.shape_cast %49 : vector<1x128x128xf32> to vector<128x128xf32>
    %cst_42 = arith.constant dense<0.000000e+00> : vector<8x128xf32>
    %51 = tpu.matmul %48, %50, %cst_42 {dimension_numbers = #tpu.dot_dimension_numbers<[1], [0], [0], [1], [0, 0, 1, 1], [], []>} : vector<8x128xf32>, vector<128x128xf32>, vector<8x128xf32> -> vector<8x128xf32>
    %c5_43 = arith.constant 5 : index
    %c0_44 = arith.constant 0 : index
    %52 = vector.load %arg3[%c5_43, %c0_44] : memref<7x128xf32, #tpu.memory_space<vmem>>, vector<1x128xf32>
    %53 = vector.broadcast %52 : vector<1x128xf32> to vector<8x128xf32>
    %54 = arith.addf %51, %53 : vector<8x128xf32>
    %cst_45 = arith.constant 0.000000e+00 : f32
    %55 = vector.broadcast %cst_45 : f32 to vector<8x128xf32>
    %56 = arith.maximumf %54, %55 : vector<8x128xf32>
    %c6 = arith.constant 6 : index
    %c0_46 = arith.constant 0 : index
    %c0_47 = arith.constant 0 : index
    %57 = vector.load %arg2[%c6, %c0_46, %c0_47] : memref<7x128x128xf32, #tpu.memory_space<vmem>>, vector<1x128x128xf32>
    %58 = vector.shape_cast %57 : vector<1x128x128xf32> to vector<128x128xf32>
    %cst_48 = arith.constant dense<0.000000e+00> : vector<8x128xf32>
    %59 = tpu.matmul %56, %58, %cst_48 {dimension_numbers = #tpu.dot_dimension_numbers<[1], [0], [0], [1], [0, 0, 1, 1], [], []>} : vector<8x128xf32>, vector<128x128xf32>, vector<8x128xf32> -> vector<8x128xf32>
    %c6_49 = arith.constant 6 : index
    %c0_50 = arith.constant 0 : index
    %60 = vector.load %arg3[%c6_49, %c0_50] : memref<7x128xf32, #tpu.memory_space<vmem>>, vector<1x128xf32>
    %61 = vector.broadcast %60 : vector<1x128xf32> to vector<8x128xf32>
    %62 = arith.addf %59, %61 : vector<8x128xf32>
    %c0_51 = arith.constant 0 : index
    %c0_52 = arith.constant 0 : index
    %63 = vector.load %arg4[%c0_51, %c0_52] : memref<8x128xf32, #tpu.memory_space<vmem>>, vector<8x128xf32>
    tpu.vector_store %arg4[%c0_51, %c0_52], %62 {strides = array<i32>} : memref<8x128xf32, #tpu.memory_space<vmem>>, vector<8x128xf32>,
    return
  }
}

</mosaic_0001>

<llo_original>
// kernel: gcn_forward.1
$region0: #{gcn_forward.1}
  #allocation0 [shape = 'u32[]', space=smem, size = 0x4, offset = 0x4, fixed_abs, tag = 'smem constant byte address 0x4 - core index']
  #allocation1 [shape = 'u32[144,128]{1,0:T(1,128)}', space=vmem, size = 0x12000, scoped, tag = 'internal scratch']
  %s0 = inlined_call_operand.vmem [shape: f32[24,16], index: 0, kind: input, shape index: {}]
  %s1 = inlined_call_operand.vmem [shape: f32[16,128], index: 1, kind: input, shape index: {}]
  %s2 = inlined_call_operand.vmem [shape: f32[7,128,128], index: 2, kind: input, shape index: {}]
  %s3 = inlined_call_operand.vmem [shape: f32[7,128], index: 3, kind: input, shape index: {}]
  %s4 = inlined_call_operand.vmem [shape: f32[8,128], index: 4, kind: output, shape index: {}]
  %s5 = sld [smem:[#allocation0]]
  $region26: #{gcn_forward.1} parent=0
    _
  %s7 = ssub.s32 1, %s5
  %s8 = scalar_select 0, %s7, %s5
  // Predicated region
  $region2: #{gcn_forward.1} parent=0 // pred_check
    _
  $region3: #{gcn_forward.1} parent=0 // pred_check_branch
    %10 = sbr.rel (0) target = $region5
  $region4: #{gcn_forward.1} parent=0 // pred_region
    _
  $region5: #{gcn_forward.1} parent=0 // pred_fallthru
    _
  // Predicated region
  $region6: #{gcn_forward.1} parent=0 // pred_check
    _
  $region7: #{gcn_forward.1} parent=0 // pred_check_branch
    %12 = sbr.rel (0) target = $region9
  $region8: #{gcn_forward.1} parent=0 // pred_region
    _
  $region9: #{gcn_forward.1} parent=0 // pred_fallthru
    _
  // Predicated region
  $region10: #{gcn_forward.1} parent=0 // pred_check
    _
  $region11: #{gcn_forward.1} parent=0 // pred_check_branch
    %14 = sbr.rel (0) target = $region13
  $region12: #{gcn_forward.1} parent=0 // pred_region
    _
  $region13: #{gcn_forward.1} parent=0 // pred_fallthru
    _
  // Predicated region
  $region14: #{gcn_forward.1} parent=0 // pred_check
    _
  $region15: #{gcn_forward.1} parent=0 // pred_check_branch
    %16 = sbr.rel (0) target = $region17
  $region16: #{gcn_forward.1} parent=0 // pred_region
    _
  $region17: #{gcn_forward.1} parent=0 // pred_fallthru
    _
  %v17 = vld [vmem:[%s0] sm:$0xff]
  %v18 = vld [vmem:[%s0 + $0x8] sm:$0xff]
  %v19 = vld [vmem:[%s0 + $0x10] sm:$0xff]
  %v20 = vld [vmem:[%s1] sm:$0xff]
  %v21 = vld [vmem:[%s1 + $0x8] sm:$0xff]
  %v22 = vld [vmem:[%s2] sm:$0xff]
  %v23 = vld [vmem:[%s2 + $0x8] sm:$0xff]
  %v24 = vld [vmem:[%s2 + $0x10] sm:$0xff]
  %v25 = vld [vmem:[%s2 + $0x18] sm:$0xff]
  %v26 = vld [vmem:[%s2 + $0x20] sm:$0xff]
  %v27 = vld [vmem:[%s2 + $0x28] sm:$0xff]
  %v28 = vld [vmem:[%s2 + $0x30] sm:$0xff]
  %v29 = vld [vmem:[%s2 + $0x38] sm:$0xff]
  %v30 = vld [vmem:[%s2 + $0x40] sm:$0xff]
  %v31 = vld [vmem:[%s2 + $0x48] sm:$0xff]
  %v32 = vld [vmem:[%s2 + $0x50] sm:$0xff]
  %v33 = vld [vmem:[%s2 + $0x58] sm:$0xff]
  %v34 = vld [vmem:[%s2 + $0x60] sm:$0xff]
  %v35 = vld [vmem:[%s2 + $0x68] sm:$0xff]
  %v36 = vld [vmem:[%s2 + $0x70] sm:$0xff]
  %v37 = vld [vmem:[%s2 + $0x78] sm:$0xff]
  %38 = vmatprep.subr.mxu0 0.0
  %39 = vmatpush1.msra.mxu0 %v37
  %40 = vmatprep.subr.mxu0 0.0
  %41 = vmatpush1.msra.mxu0 %v36
  %42 = vmatprep.subr.mxu0 0.0
  %43 = vmatpush1.msra.mxu0 %v35
  %44 = vmatprep.subr.mxu0 0.0
  %45 = vmatpush1.msra.mxu0 %v34
  %46 = vmatprep.subr.mxu0 0.0
  %47 = vmatpush1.msra.mxu0 %v33
  %48 = vmatprep.subr.mxu0 0.0
  %49 = vmatpush1.msra.mxu0 %v32
  %50 = vmatprep.subr.mxu0 0.0
  %51 = vmatpush1.msra.mxu0 %v31
  %52 = vmatprep.subr.mxu0 0.0
  %53 = vmatpush1.msra.mxu0 %v30
  %54 = vmatprep.subr.mxu0 0.0
  %55 = vmatpush1.msra.mxu0 %v29
  %56 = vmatprep.subr.mxu0 0.0
  %57 = vmatpush1.msra.mxu0 %v28
  %58 = vmatprep.subr.mxu0 0.0
  %59 = vmatpush1.msra.mxu0 %v27
  %60 = vmatprep.subr.mxu0 0.0
  %61 = vmatpush1.msra.mxu0 %v26
  %62 = vmatprep.subr.mxu0 0.0
  %63 = vmatpush1.msra.mxu0 %v25
  %64 = vmatprep.subr.mxu0 0.0
  %65 = vmatpush1.msra.mxu0 %v24
  %66 = vmatprep.subr.mxu0 0.0
  %67 = vmatpush1.msra.mxu0 %v23
  %68 = vmatprep.subr.mxu0 0.0
  %69 = vmatpush1.msra.mxu0 %v22
  %70 = vmatprep.subr.mxu0 0.0
  %71 = vmatpush2.msra.mxu0 0.0
  %72 = vmatprep.subr.mxu0 0.0
  %73 = vmatpush2.msra.mxu0 0.0
  %74 = vmatprep.subr.mxu0 0.0
  %75 = vmatpush2.msra.mxu0 0.0
  %76 = vmatprep.subr.mxu0 0.0
  %77 = vmatpush2.msra.mxu0 0.0
  %78 = vmatprep.subr.mxu0 0.0
  %79 = vmatpush2.msra.mxu0 0.0
  %80 = vmatprep.subr.mxu0 0.0
  %81 = vmatpush2.msra.mxu0 0.0
  %82 = vmatprep.subr.mxu0 0.0
  %83 = vmatpush2.msra.mxu0 0.0
  %84 = vmatprep.subr.mxu0 0.0
  %85 = vmatpush2.msra.mxu0 0.0
  %86 = vmatprep.subr.mxu0 0.0
  %87 = vmatpush2.msra.mxu0 0.0
  %88 = vmatprep.subr.mxu0 0.0
  %89 = vmatpush2.msra.mxu0 0.0
  %90 = vmatprep.subr.mxu0 0.0
  %91 = vmatpush2.msra.mxu0 0.0
  %92 = vmatprep.subr.mxu0 0.0
  %93 = vmatpush2.msra.mxu0 0.0
  %94 = vmatprep.subr.mxu0 0.0
  %95 = vmatpush2.msra.mxu0 0.0
  %96 = vmatprep.subr.mxu0 0.0
  %97 = vmatpush2.msra.mxu0 0.0
  %98 = vmatprep.subr.mxu0 0.0
  %99 = vmatpush2.msra.mxu0 0.0
  %100 = vmatprep.subr.mxu0 0.0
  %101 = vmatpush2.msra.mxu0 0.0
  %102 = vmatprep.mubr.f32.mxu0 0.0
  %103 = vmatmul.mubr.f32.gmra.mxu0 %v20
  %v104 = vpop.f32.mrf.mxu0
  %v105 = vadd.f32 0.0, %v104
  %v106 = vpop.f32.mrf.mxu0
  %107 = vmatprep.mubr.f32.mxu0 0.0
  %108 = vmatmul.mubr.f32.gmra.mxu0 %v21
  %v109 = vpop.f32.mrf.mxu0
  %v110 = vadd.f32 0.0, %v109
  %v111 = vpop.f32.mrf.mxu0
  %112 = vdwg.mxu0
  %v113 = vld [vmem:[%s3] sm:$0x1]
  %v114 = vlaneseq
  %v115 = vshrl.u32 %v114, 7
  %v116 = vsub.s32 0, %v115
  %v117 = vrot.slane %v113, %v116
  %vm118 = vcmask 130048
  %v120 = vsel %vm118, %v17, 0
  %v123 = vsel %vm118, %v18, 0
  %125 = vmatprep.subr.mxu0 0.0
  %126 = vmatpush1.msra.mxu0 0.0
  %127 = vmatprep.subr.mxu0 0.0
  %128 = vmatpush1.msra.mxu0 0.0
  %129 = vmatprep.subr.mxu0 0.0
  %130 = vmatpush1.msra.mxu0 0.0
  %131 = vmatprep.subr.mxu0 0.0
  %132 = vmatpush1.msra.mxu0 0.0
  %133 = vmatprep.subr.mxu0 0.0
  %134 = vmatpush1.msra.mxu0 0.0
  %135 = vmatprep.subr.mxu0 0.0
  %136 = vmatpush1.msra.mxu0 0.0
  %137 = vmatprep.subr.mxu0 0.0
  %138 = vmatpush1.msra.mxu0 0.0
  %139 = vmatprep.subr.mxu0 0.0
  %140 = vmatpush1.msra.mxu0 0.0
  %141 = vmatprep.subr.mxu0 0.0
  %142 = vmatpush1.msra.mxu0 0.0
  %143 = vmatprep.subr.mxu0 0.0
  %144 = vmatpush1.msra.mxu0 0.0
  %145 = vmatprep.subr.mxu0 0.0
  %146 = vmatpush1.msra.mxu0 0.0
  %147 = vmatprep.subr.mxu0 0.0
  %148 = vmatpush1.msra.mxu0 0.0
  %149 = vmatprep.subr.mxu0 0.0
  %150 = vmatpush1.msra.mxu0 0.0
  %151 = vmatprep.subr.mxu0 0.0
  %152 = vmatpush1.msra.mxu0 0.0
  %153 = vmatprep.subr.mxu0 0.0
  %154 = vmatpush1.msra.mxu0 %v110
  %155 = vmatprep.subr.mxu0 0.0
  %156 = vmatpush1.msra.mxu0 %v105
  %157 = vmatprep.subr.mxu0 0.0
  %158 = vmatpush2.msra.mxu0 0.0
  %159 = vmatprep.subr.mxu0 0.0
  %160 = vmatpush2.msra.mxu0 0.0
  %161 = vmatprep.subr.mxu0 0.0
  %162 = vmatpush2.msra.mxu0 0.0
  %163 = vmatprep.subr.mxu0 0.0
  %164 = vmatpush2.msra.mxu0 0.0
  %165 = vmatprep.subr.mxu0 0.0
  %166 = vmatpush2.msra.mxu0 0.0
  %167 = vmatprep.subr.mxu0 0.0
  %168 = vmatpush2.msra.mxu0 0.0
  %169 = vmatprep.subr.mxu0 0.0
  %170 = vmatpush2.msra.mxu0 0.0
  %171 = vmatprep.subr.mxu0 0.0
  %172 = vmatpush2.msra.mxu0 0.0
  %173 = vmatprep.subr.mxu0 0.0
  %174 = vmatpush2.msra.mxu0 0.0
  %175 = vmatprep.subr.mxu0 0.0
  %176 = vmatpush2.msra.mxu0 0.0
  %177 = vmatprep.subr.mxu0 0.0
  %178 = vmatpush2.msra.mxu0 0.0
  %179 = vmatprep.subr.mxu0 0.0
  %180 = vmatpush2.msra.mxu0 0.0
  %181 = vmatprep.subr.mxu0 0.0
  %182 = vmatpush2.msra.mxu0 0.0
  %183 = vmatprep.subr.mxu0 0.0
  %184 = vmatpush2.msra.mxu0 0.0
  %185 = vmatprep.subr.mxu0 0.0
  %186 = vmatpush2.msra.mxu0 0.0
  %187 = vmatprep.subr.mxu0 0.0
  %188 = vmatpush2.msra.mxu0 0.0
  %189 = vmatprep.mubr.f32.mxu0 0.0
  %190 = vmatmul.mubr.f32.gmra.mxu0 %v120
  %v191 = vpop.f32.mrf.mxu0
  %v192 = vadd.f32 %v117, %v191
  %v193 = vpop.f32.mrf.mxu0
  %194 = vmatprep.mubr.f32.mxu0 0.0
  %195 = vmatmul.mubr.f32.gmra.mxu0 %v123
  %v196 = vpop.f32.mrf.mxu0
  %v197 = vadd.f32 %v117, %v196
  %v198 = vpop.f32.mrf.mxu0
  %199 = vdwg.mxu0
  %v200 = vmax.f32 %v192, 0.0
  %v201 = vmax.f32 %v197, 0.0
  %s202 = scalar_lea.vmem %s2, 128
  %v203 = vld [vmem:[%s202] sm:$0xff]
  %v204 = vld [vmem:[%s202 + $0x8] sm:$0xff]
  %v205 = vld [vmem:[%s202 + $0x10] sm:$0xff]
  %v206 = vld [vmem:[%s202 + $0x18] sm:$0xff]
  %v207 = vld [vmem:[%s202 + $0x20] sm:$0xff]
  %v208 = vld [vmem:[%s202 + $0x28] sm:$0xff]
  %v209 = vld [vmem:[%s202 + $0x30] sm:$0xff]
  %v210 = vld [vmem:[%s202 + $0x38] sm:$0xff]
  %v211 = vld [vmem:[%s202 + $0x40] sm:$0xff]
  %v212 = vld [vmem:[%s202 + $0x48] sm:$0xff]
  %v213 = vld [vmem:[%s202 + $0x50] sm:$0xff]
  %v214 = vld [vmem:[%s202 + $0x58] sm:$0xff]
  %v215 = vld [vmem:[%s202 + $0x60] sm:$0xff]
  %v216 = vld [vmem:[%s202 + $0x68] sm:$0xff]
  %v217 = vld [vmem:[%s202 + $0x70] sm:$0xff]
  %v218 = vld [vmem:[%s202 + $0x78] sm:$0xff]
  %219 = vmatprep.subr.mxu0 0.0
  %220 = vmatpush1.msra.mxu0 %v218
  %221 = vmatprep.subr.mxu0 0.0
  %222 = vmatpush1.msra.mxu0 %v217
  %223 = vmatprep.subr.mxu0 0.0
  %224 = vmatpush1.msra.mxu0 %v216
  %225 = vmatprep.subr.mxu0 0.0
  %226 = vmatpush1.msra.mxu0 %v215
  %227 = vmatprep.subr.mxu0 0.0
  %228 = vmatpush1.msra.mxu0 %v214
  %229 = vmatprep.subr.mxu0 0.0
  %230 = vmatpush1.msra.mxu0 %v213
  %231 = vmatprep.subr.mxu0 0.0
  %232 = vmatpush1.msra.mxu0 %v212
  %233 = vmatprep.subr.mxu0 0.0
  %234 = vmatpush1.msra.mxu0 %v211
  %235 = vmatprep.subr.mxu0 0.0
  %236 = vmatpush1.msra.mxu0 %v210
  %237 = vmatprep.subr.mxu0 0.0
  %238 = vmatpush1.msra.mxu0 %v209
  %239 = vmatprep.subr.mxu0 0.0
  %240 = vmatpush1.msra.mxu0 %v208
  %241 = vmatprep.subr.mxu0 0.0
  %242 = vmatpush1.msra.mxu0 %v207
  %243 = vmatprep.subr.mxu0 0.0
  %244 = vmatpush1.msra.mxu0 %v206
  %245 = vmatprep.subr.mxu0 0.0
  %246 = vmatpush1.msra.mxu0 %v205
  %247 = vmatprep.subr.mxu0 0.0
  %248 = vmatpush1.msra.mxu0 %v204
  %249 = vmatprep.subr.mxu0 0.0
  %250 = vmatpush1.msra.mxu0 %v203
  %251 = vmatprep.subr.mxu0 0.0
  %252 = vmatpush2.msra.mxu0 0.0
  %253 = vmatprep.subr.mxu0 0.0
  %254 = vmatpush2.msra.mxu0 0.0
  %255 = vmatprep.subr.mxu0 0.0
  %256 = vmatpush2.msra.mxu0 0.0
  %257 = vmatprep.subr.mxu0 0.0
  %258 = vmatpush2.msra.mxu0 0.0
  %259 = vmatprep.subr.mxu0 0.0
  %260 = vmatpush2.msra.mxu0 0.0
  %261 = vmatprep.subr.mxu0 0.0
  %262 = vmatpush2.msra.mxu0 0.0
  %263 = vmatprep.subr.mxu0 0.0
  %264 = vmatpush2.msra.mxu0 0.0
  %265 = vmatprep.subr.mxu0 0.0
  %266 = vmatpush2.msra.mxu0 0.0
  %267 = vmatprep.subr.mxu0 0.0
  %268 = vmatpush2.msra.mxu0 0.0
  %269 = vmatprep.subr.mxu0 0.0
  %270 = vmatpush2.msra.mxu0 0.0
  %271 = vmatprep.subr.mxu0 0.0
  %272 = vmatpush2.msra.mxu0 0.0
  %273 = vmatprep.subr.mxu0 0.0
  %274 = vmatpush2.msra.mxu0 0.0
  %275 = vmatprep.subr.mxu0 0.0
  %276 = vmatpush2.msra.mxu0 0.0
  %277 = vmatprep.subr.mxu0 0.0
  %278 = vmatpush2.msra.mxu0 0.0
  %279 = vmatprep.subr.mxu0 0.0
  %280 = vmatpush2.msra.mxu0 0.0
  %281 = vmatprep.subr.mxu0 0.0
  %282 = vmatpush2.msra.mxu0 0.0
  %283 = vmatprep.mubr.f32.mxu0 0.0
  %284 = vmatmul.mubr.f32.gmra.mxu0 %v200
  %v285 = vpop.f32.mrf.mxu0
  %v286 = vadd.f32 0.0, %v285
  %v287 = vpop.f32.mrf.mxu0
  %288 = vmatprep.mubr.f32.mxu0 0.0
  %289 = vmatmul.mubr.f32.gmra.mxu0 %v201
  %v290 = vpop.f32.mrf.mxu0
  %v291 = vadd.f32 0.0, %v290
  %v292 = vpop.f32.mrf.mxu0
  %293 = vdwg.mxu0
  %v294 = vld [vmem:[%s3 + $0x1] sm:$0x1]
  %v295 = vlaneseq
  %v296 = vshrl.u32 %v295, 7
  %v297 = vsub.s32 0, %v296
  %v298 = vrot.slane %v294, %v297
  %299 = vmatprep.subr.mxu0 0.0
  %300 = vmatpush1.msra.mxu0 0.0
  %301 = vmatprep.subr.mxu0 0.0
  %302 = vmatpush1.msra.mxu0 0.0
  %303 = vmatprep.subr.mxu0 0.0
  %304 = vmatpush1.msra.mxu0 0.0
  %305 = vmatprep.subr.mxu0 0.0
  %306 = vmatpush1.msra.mxu0 0.0
  %307 = vmatprep.subr.mxu0 0.0
  %308 = vmatpush1.msra.mxu0 0.0
  %309 = vmatprep.subr.mxu0 0.0
  %310 = vmatpush1.msra.mxu0 0.0
  %311 = vmatprep.subr.mxu0 0.0
  %312 = vmatpush1.msra.mxu0 0.0
  %313 = vmatprep.subr.mxu0 0.0
  %314 = vmatpush1.msra.mxu0 0.0
  %315 = vmatprep.subr.mxu0 0.0
  %316 = vmatpush1.msra.mxu0 0.0
  %317 = vmatprep.subr.mxu0 0.0
  %318 = vmatpush1.msra.mxu0 0.0
  %319 = vmatprep.subr.mxu0 0.0
  %320 = vmatpush1.msra.mxu0 0.0
  %321 = vmatprep.subr.mxu0 0.0
  %322 = vmatpush1.msra.mxu0 0.0
  %323 = vmatprep.subr.mxu0 0.0
  %324 = vmatpush1.msra.mxu0 0.0
  %325 = vmatprep.subr.mxu0 0.0
  %326 = vmatpush1.msra.mxu0 0.0
  %327 = vmatprep.subr.mxu0 0.0
  %328 = vmatpush1.msra.mxu0 %v291
  %329 = vmatprep.subr.mxu0 0.0
  %330 = vmatpush1.msra.mxu0 %v286
  %331 = vmatprep.subr.mxu0 0.0
  %332 = vmatpush2.msra.mxu0 0.0
  %333 = vmatprep.subr.mxu0 0.0
  %334 = vmatpush2.msra.mxu0 0.0
  %335 = vmatprep.subr.mxu0 0.0
  %336 = vmatpush2.msra.mxu0 0.0
  %337 = vmatprep.subr.mxu0 0.0
  %338 = vmatpush2.msra.mxu0 0.0
  %339 = vmatprep.subr.mxu0 0.0
  %340 = vmatpush2.msra.mxu0 0.0
  %341 = vmatprep.subr.mxu0 0.0
  %342 = vmatpush2.msra.mxu0 0.0
  %343 = vmatprep.subr.mxu0 0.0
  %344 = vmatpush2.msra.mxu0 0.0
  %345 = vmatprep.subr.mxu0 0.0
  %346 = vmatpush2.msra.mxu0 0.0
  %347 = vmatprep.subr.mxu0 0.0
  %348 = vmatpush2.msra.mxu0 0.0
  %349 = vmatprep.subr.mxu0 0.0
  %350 = vmatpush2.msra.mxu0 0.0
  %351 = vmatprep.subr.mxu0 0.0
  %352 = vmatpush2.msra.mxu0 0.0
  %353 = vmatprep.subr.mxu0 0.0
  %354 = vmatpush2.msra.mxu0 0.0
  %355 = vmatprep.subr.mxu0 0.0
  %356 = vmatpush2.msra.mxu0 0.0
  %357 = vmatprep.subr.mxu0 0.0
  %358 = vmatpush2.msra.mxu0 0.0
  %359 = vmatprep.subr.mxu0 0.0
  %360 = vmatpush2.msra.mxu0 0.0
  %361 = vmatprep.subr.mxu0 0.0
  %362 = vmatpush2.msra.mxu0 0.0
  %363 = vmatprep.mubr.f32.mxu0 0.0
  %364 = vmatmul.mubr.f32.gmra.mxu0 %v120
  %v365 = vpop.f32.mrf.mxu0
  %v366 = vadd.f32 %v298, %v365
  %v367 = vpop.f32.mrf.mxu0
  %368 = vmatprep.mubr.f32.mxu0 0.0
  %369 = vmatmul.mubr.f32.gmra.mxu0 %v123
  %v370 = vpop.f32.mrf.mxu0
  %v371 = vadd.f32 %v298, %v370
  %v372 = vpop.f32.mrf.mxu0
  %373 = vdwg.mxu0
  %v374 = vmax.f32 %v366, 0.0
  %v375 = vmax.f32 %v371, 0.0
  %s376 = scalar_lea.vmem %s2, 256
  %v377 = vld [vmem:[%s376] sm:$0xff]
  %v378 = vld [vmem:[%s376 + $0x8] sm:$0xff]
  %v379 = vld [vmem:[%s376 + $0x10] sm:$0xff]
  %v380 = vld [vmem:[%s376 + $0x18] sm:$0xff]
  %v381 = vld [vmem:[%s376 + $0x20] sm:$0xff]
  %v382 = vld [vmem:[%s376 + $0x28] sm:$0xff]
  %v383 = vld [vmem:[%s376 + $0x30] sm:$0xff]
  %v384 = vld [vmem:[%s376 + $0x38] sm:$0xff]
  %v385 = vld [vmem:[%s376 + $0x40] sm:$0xff]
  %v386 = vld [vmem:[%s376 + $0x48] sm:$0xff]
  %v387 = vld [vmem:[%s376 + $0x50] sm:$0xff]
  %v388 = vld [vmem:[%s376 + $0x58] sm:$0xff]
  %v389 = vld [vmem:[%s376 + $0x60] sm:$0xff]
  %v390 = vld [vmem:[%s376 + $0x68] sm:$0xff]
  %v391 = vld [vmem:[%s376 + $0x70] sm:$0xff]
  %v392 = vld [vmem:[%s376 + $0x78] sm:$0xff]
  %393 = vmatprep.subr.mxu0 0.0
  %394 = vmatpush1.msra.mxu0 %v392
  %395 = vmatprep.subr.mxu0 0.0
  %396 = vmatpush1.msra.mxu0 %v391
  %397 = vmatprep.subr.mxu0 0.0
  %398 = vmatpush1.msra.mxu0 %v390
  %399 = vmatprep.subr.mxu0 0.0
  %400 = vmatpush1.msra.mxu0 %v389
  %401 = vmatprep.subr.mxu0 0.0
  %402 = vmatpush1.msra.mxu0 %v388
  %403 = vmatprep.subr.mxu0 0.0
  %404 = vmatpush1.msra.mxu0 %v387
  %405 = vmatprep.subr.mxu0 0.0
  %406 = vmatpush1.msra.mxu0 %v386
  %407 = vmatprep.subr.mxu0 0.0
  %408 = vmatpush1.msra.mxu0 %v385
  %409 = vmatprep.subr.mxu0 0.0
  %410 = vmatpush1.msra.mxu0 %v384
  %411 = vmatprep.subr.mxu0 0.0
  %412 = vmatpush1.msra.mxu0 %v383
  %413 = vmatprep.subr.mxu0 0.0
  %414 = vmatpush1.msra.mxu0 %v382
  %415 = vmatprep.subr.mxu0 0.0
  %416 = vmatpush1.msra.mxu0 %v381
  %417 = vmatprep.subr.mxu0 0.0
  %418 = vmatpush1.msra.mxu0 %v380
  %419 = vmatprep.subr.mxu0 0.0
  %420 = vmatpush1.msra.mxu0 %v379
  %421 = vmatprep.subr.mxu0 0.0
  %422 = vmatpush1.msra.mxu0 %v378
  %423 = vmatprep.subr.mxu0 0.0
  %424 = vmatpush1.msra.mxu0 %v377
  %425 = vmatprep.subr.mxu0 0.0
  %426 = vmatpush2.msra.mxu0 0.0
  %427 = vmatprep.subr.mxu0 0.0
  %428 = vmatpush2.msra.mxu0 0.0
  %429 = vmatprep.subr.mxu0 0.0
  %430 = vmatpush2.msra.mxu0 0.0
  %431 = vmatprep.subr.mxu0 0.0
  %432 = vmatpush2.msra.mxu0 0.0
  %433 = vmatprep.subr.mxu0 0.0
  %434 = vmatpush2.msra.mxu0 0.0
  %435 = vmatprep.subr.mxu0 0.0
  %436 = vmatpush2.msra.mxu0 0.0
  %437 = vmatprep.subr.mxu0 0.0
  %438 = vmatpush2.msra.mxu0 0.0
  %439 = vmatprep.subr.mxu0 0.0
  %440 = vmatpush2.msra.mxu0 0.0
  %441 = vmatprep.subr.mxu0 0.0
  %442 = vmatpush2.msra.mxu0 0.0
  %443 = vmatprep.subr.mxu0 0.0
  %444 = vmatpush2.msra.mxu0 0.0
  %445 = vmatprep.subr.mxu0 0.0
  %446 = vmatpush2.msra.mxu0 0.0
  %447 = vmatprep.subr.mxu0 0.0
  %448 = vmatpush2.msra.mxu0 0.0
  %449 = vmatprep.subr.mxu0 0.0
  %450 = vmatpush2.msra.mxu0 0.0
  %451 = vmatprep.subr.mxu0 0.0
  %452 = vmatpush2.msra.mxu0 0.0
  %453 = vmatprep.subr.mxu0 0.0
  %454 = vmatpush2.msra.mxu0 0.0
  %455 = vmatprep.subr.mxu0 0.0
  %456 = vmatpush2.msra.mxu0 0.0
  %457 = vmatprep.mubr.f32.mxu0 0.0
  %458 = vmatmul.mubr.f32.gmra.mxu0 %v374
  %v459 = vpop.f32.mrf.mxu0
  %v460 = vadd.f32 0.0, %v459
  %v461 = vpop.f32.mrf.mxu0
  %462 = vmatprep.mubr.f32.mxu0 0.0
  %463 = vmatmul.mubr.f32.gmra.mxu0 %v375
  %v464 = vpop.f32.mrf.mxu0
  %v465 = vadd.f32 0.0, %v464
  %v466 = vpop.f32.mrf.mxu0
  %467 = vdwg.mxu0
  %v468 = vld [vmem:[%s3 + $0x2] sm:$0x1]
  %v469 = vlaneseq
  %v470 = vshrl.u32 %v469, 7
  %v471 = vsub.s32 0, %v470
  %v472 = vrot.slane %v468, %v471
  %473 = vmatprep.subr.mxu0 0.0
  %474 = vmatpush1.msra.mxu0 0.0
  %475 = vmatprep.subr.mxu0 0.0
  %476 = vmatpush1.msra.mxu0 0.0
  %477 = vmatprep.subr.mxu0 0.0
  %478 = vmatpush1.msra.mxu0 0.0
  %479 = vmatprep.subr.mxu0 0.0
  %480 = vmatpush1.msra.mxu0 0.0
  %481 = vmatprep.subr.mxu0 0.0
  %482 = vmatpush1.msra.mxu0 0.0
  %483 = vmatprep.subr.mxu0 0.0
  %484 = vmatpush1.msra.mxu0 0.0
  %485 = vmatprep.subr.mxu0 0.0
  %486 = vmatpush1.msra.mxu0 0.0
  %487 = vmatprep.subr.mxu0 0.0
  %488 = vmatpush1.msra.mxu0 0.0
  %489 = vmatprep.subr.mxu0 0.0
  %490 = vmatpush1.msra.mxu0 0.0
  %491 = vmatprep.subr.mxu0 0.0
  %492 = vmatpush1.msra.mxu0 0.0
  %493 = vmatprep.subr.mxu0 0.0
  %494 = vmatpush1.msra.mxu0 0.0
  %495 = vmatprep.subr.mxu0 0.0
  %496 = vmatpush1.msra.mxu0 0.0
  %497 = vmatprep.subr.mxu0 0.0
  %498 = vmatpush1.msra.mxu0 0.0
  %499 = vmatprep.subr.mxu0 0.0
  %500 = vmatpush1.msra.mxu0 0.0
  %501 = vmatprep.subr.mxu0 0.0
  %502 = vmatpush1.msra.mxu0 %v465
  %503 = vmatprep.subr.mxu0 0.0
  %504 = vmatpush1.msra.mxu0 %v460
  %505 = vmatprep.subr.mxu0 0.0
  %506 = vmatpush2.msra.mxu0 0.0
  %507 = vmatprep.subr.mxu0 0.0
  %508 = vmatpush2.msra.mxu0 0.0
  %509 = vmatprep.subr.mxu0 0.0
  %510 = vmatpush2.msra.mxu0 0.0
  %511 = vmatprep.subr.mxu0 0.0
  %512 = vmatpush2.msra.mxu0 0.0
  %513 = vmatprep.subr.mxu0 0.0
  %514 = vmatpush2.msra.mxu0 0.0
  %515 = vmatprep.subr.mxu0 0.0
  %516 = vmatpush2.msra.mxu0 0.0
  %517 = vmatprep.subr.mxu0 0.0
  %518 = vmatpush2.msra.mxu0 0.0
  %519 = vmatprep.subr.mxu0 0.0
  %520 = vmatpush2.msra.mxu0 0.0
  %521 = vmatprep.subr.mxu0 0.0
  %522 = vmatpush2.msra.mxu0 0.0
  %523 = vmatprep.subr.mxu0 0.0
  %524 = vmatpush2.msra.mxu0 0.0
  %525 = vmatprep.subr.mxu0 0.0
  %526 = vmatpush2.msra.mxu0 0.0
  %527 = vmatprep.subr.mxu0 0.0
  %528 = vmatpush2.msra.mxu0 0.0
  %529 = vmatprep.subr.mxu0 0.0
  %530 = vmatpush2.msra.mxu0 0.0
  %531 = vmatprep.subr.mxu0 0.0
  %532 = vmatpush2.msra.mxu0 0.0
  %533 = vmatprep.subr.mxu0 0.0
  %534 = vmatpush2.msra.mxu0 0.0
  %535 = vmatprep.subr.mxu0 0.0
  %536 = vmatpush2.msra.mxu0 0.0
  %537 = vmatprep.mubr.f32.mxu0 0.0
  %538 = vmatmul.mubr.f32.gmra.mxu0 %v120
  %v539 = vpop.f32.mrf.mxu0
  %v540 = vadd.f32 %v472, %v539
  %v541 = vpop.f32.mrf.mxu0
  %542 = vmatprep.mubr.f32.mxu0 0.0
  %543 = vmatmul.mubr.f32.gmra.mxu0 %v123
  %v544 = vpop.f32.mrf.mxu0
  %v545 = vadd.f32 %v472, %v544
  %v546 = vpop.f32.mrf.mxu0
  %547 = vdwg.mxu0
  %v548 = vmax.f32 %v540, 0.0
  %v549 = vmax.f32 %v545, 0.0
  %s550 = scalar_lea.vmem %s2, 384
  %v551 = vld [vmem:[%s550] sm:$0xff]
  %v552 = vld [vmem:[%s550 + $0x8] sm:$0xff]
  %v553 = vld [vmem:[%s550 + $0x10] sm:$0xff]
  %v554 = vld [vmem:[%s550 + $0x18] sm:$0xff]
  %v555 = vld [vmem:[%s550 + $0x20] sm:$0xff]
  %v556 = vld [vmem:[%s550 + $0x28] sm:$0xff]
  %v557 = vld [vmem:[%s550 + $0x30] sm:$0xff]
  %v558 = vld [vmem:[%s550 + $0x38] sm:$0xff]
  %v559 = vld [vmem:[%s550 + $0x40] sm:$0xff]
  %v560 = vld [vmem:[%s550 + $0x48] sm:$0xff]
  %v561 = vld [vmem:[%s550 + $0x50] sm:$0xff]
  %v562 = vld [vmem:[%s550 + $0x58] sm:$0xff]
  %v563 = vld [vmem:[%s550 + $0x60] sm:$0xff]
  %v564 = vld [vmem:[%s550 + $0x68] sm:$0xff]
  %v565 = vld [vmem:[%s550 + $0x70] sm:$0xff]
  %v566 = vld [vmem:[%s550 + $0x78] sm:$0xff]
  %567 = vmatprep.subr.mxu0 0.0
  %568 = vmatpush1.msra.mxu0 %v566
  %569 = vmatprep.subr.mxu0 0.0
  %570 = vmatpush1.msra.mxu0 %v565
  %571 = vmatprep.subr.mxu0 0.0
  %572 = vmatpush1.msra.mxu0 %v564
  %573 = vmatprep.subr.mxu0 0.0
  %574 = vmatpush1.msra.mxu0 %v563
  %575 = vmatprep.subr.mxu0 0.0
  %576 = vmatpush1.msra.mxu0 %v562
  %577 = vmatprep.subr.mxu0 0.0
  %578 = vmatpush1.msra.mxu0 %v561
  %579 = vmatprep.subr.mxu0 0.0
  %580 = vmatpush1.msra.mxu0 %v560
  %581 = vmatprep.subr.mxu0 0.0
  %582 = vmatpush1.msra.mxu0 %v559
  %583 = vmatprep.subr.mxu0 0.0
  %584 = vmatpush1.msra.mxu0 %v558
  %585 = vmatprep.subr.mxu0 0.0
  %586 = vmatpush1.msra.mxu0 %v557
  %587 = vmatprep.subr.mxu0 0.0
  %588 = vmatpush1.msra.mxu0 %v556
  %589 = vmatprep.subr.mxu0 0.0
  %590 = vmatpush1.msra.mxu0 %v555
  %591 = vmatprep.subr.mxu0 0.0
  %592 = vmatpush1.msra.mxu0 %v554
  %593 = vmatprep.subr.mxu0 0.0
  %594 = vmatpush1.msra.mxu0 %v553
  %595 = vmatprep.subr.mxu0 0.0
  %596 = vmatpush1.msra.mxu0 %v552
  %597 = vmatprep.subr.mxu0 0.0
  %598 = vmatpush1.msra.mxu0 %v551
  %599 = vmatprep.subr.mxu0 0.0
  %600 = vmatpush2.msra.mxu0 0.0
  %601 = vmatprep.subr.mxu0 0.0
  %602 = vmatpush2.msra.mxu0 0.0
  %603 = vmatprep.subr.mxu0 0.0
  %604 = vmatpush2.msra.mxu0 0.0
  %605 = vmatprep.subr.mxu0 0.0
  %606 = vmatpush2.msra.mxu0 0.0
  %607 = vmatprep.subr.mxu0 0.0
  %608 = vmatpush2.msra.mxu0 0.0
  %609 = vmatprep.subr.mxu0 0.0
  %610 = vmatpush2.msra.mxu0 0.0
  %611 = vmatprep.subr.mxu0 0.0
  %612 = vmatpush2.msra.mxu0 0.0
  %613 = vmatprep.subr.mxu0 0.0
  %614 = vmatpush2.msra.mxu0 0.0
  %615 = vmatprep.subr.mxu0 0.0
  %616 = vmatpush2.msra.mxu0 0.0
  %617 = vmatprep.subr.mxu0 0.0
  %618 = vmatpush2.msra.mxu0 0.0
  %619 = vmatprep.subr.mxu0 0.0
  %620 = vmatpush2.msra.mxu0 0.0
  %621 = vmatprep.subr.mxu0 0.0
  %622 = vmatpush2.msra.mxu0 0.0
  %623 = vmatprep.subr.mxu0 0.0
  %624 = vmatpush2.msra.mxu0 0.0
  %625 = vmatprep.subr.mxu0 0.0
  %626 = vmatpush2.msra.mxu0 0.0
  %627 = vmatprep.subr.mxu0 0.0
  %628 = vmatpush2.msra.mxu0 0.0
  %629 = vmatprep.subr.mxu0 0.0
  %630 = vmatpush2.msra.mxu0 0.0
  %631 = vmatprep.mubr.f32.mxu0 0.0
  %632 = vmatmul.mubr.f32.gmra.mxu0 %v548
  %v633 = vpop.f32.mrf.mxu0
  %v634 = vadd.f32 0.0, %v633
  %v635 = vpop.f32.mrf.mxu0
  %636 = vmatprep.mubr.f32.mxu0 0.0
  %637 = vmatmul.mubr.f32.gmra.mxu0 %v549
  %v638 = vpop.f32.mrf.mxu0
  %v639 = vadd.f32 0.0, %v638
  %v640 = vpop.f32.mrf.mxu0
  %641 = vdwg.mxu0
  %v642 = vld [vmem:[%s3 + $0x3] sm:$0x1]
  %v643 = vlaneseq
  %v644 = vshrl.u32 %v643, 7
  %v645 = vsub.s32 0, %v644
  %v646 = vrot.slane %v642, %v645
  %647 = vmatprep.subr.mxu0 0.0
  %648 = vmatpush1.msra.mxu0 0.0
  %649 = vmatprep.subr.mxu0 0.0
  %650 = vmatpush1.msra.mxu0 0.0
  %651 = vmatprep.subr.mxu0 0.0
  %652 = vmatpush1.msra.mxu0 0.0
  %653 = vmatprep.subr.mxu0 0.0
  %654 = vmatpush1.msra.mxu0 0.0
  %655 = vmatprep.subr.mxu0 0.0
  %656 = vmatpush1.msra.mxu0 0.0
  %657 = vmatprep.subr.mxu0 0.0
  %658 = vmatpush1.msra.mxu0 0.0
  %659 = vmatprep.subr.mxu0 0.0
  %660 = vmatpush1.msra.mxu0 0.0
  %661 = vmatprep.subr.mxu0 0.0
  %662 = vmatpush1.msra.mxu0 0.0
  %663 = vmatprep.subr.mxu0 0.0
  %664 = vmatpush1.msra.mxu0 0.0
  %665 = vmatprep.subr.mxu0 0.0
  %666 = vmatpush1.msra.mxu0 0.0
  %667 = vmatprep.subr.mxu0 0.0
  %668 = vmatpush1.msra.mxu0 0.0
  %669 = vmatprep.subr.mxu0 0.0
  %670 = vmatpush1.msra.mxu0 0.0
  %671 = vmatprep.subr.mxu0 0.0
  %672 = vmatpush1.msra.mxu0 0.0
  %673 = vmatprep.subr.mxu0 0.0
  %674 = vmatpush1.msra.mxu0 0.0
  %675 = vmatprep.subr.mxu0 0.0
  %676 = vmatpush1.msra.mxu0 %v639
  %677 = vmatprep.subr.mxu0 0.0
  %678 = vmatpush1.msra.mxu0 %v634
  %679 = vmatprep.subr.mxu0 0.0
  %680 = vmatpush2.msra.mxu0 0.0
  %681 = vmatprep.subr.mxu0 0.0
  %682 = vmatpush2.msra.mxu0 0.0
  %683 = vmatprep.subr.mxu0 0.0
  %684 = vmatpush2.msra.mxu0 0.0
  %685 = vmatprep.subr.mxu0 0.0
  %686 = vmatpush2.msra.mxu0 0.0
  %687 = vmatprep.subr.mxu0 0.0
  %688 = vmatpush2.msra.mxu0 0.0
  %689 = vmatprep.subr.mxu0 0.0
  %690 = vmatpush2.msra.mxu0 0.0
  %691 = vmatprep.subr.mxu0 0.0
  %692 = vmatpush2.msra.mxu0 0.0
  %693 = vmatprep.subr.mxu0 0.0
  %694 = vmatpush2.msra.mxu0 0.0
  %695 = vmatprep.subr.mxu0 0.0
  %696 = vmatpush2.msra.mxu0 0.0
  %697 = vmatprep.subr.mxu0 0.0
  %698 = vmatpush2.msra.mxu0 0.0
  %699 = vmatprep.subr.mxu0 0.0
  %700 = vmatpush2.msra.mxu0 0.0
  %701 = vmatprep.subr.mxu0 0.0
  %702 = vmatpush2.msra.mxu0 0.0
  %703 = vmatprep.subr.mxu0 0.0
  %704 = vmatpush2.msra.mxu0 0.0
  %705 = vmatprep.subr.mxu0 0.0
  %706 = vmatpush2.msra.mxu0 0.0
  %707 = vmatprep.subr.mxu0 0.0
  %708 = vmatpush2.msra.mxu0 0.0
  %709 = vmatprep.subr.mxu0 0.0
  %710 = vmatpush2.msra.mxu0 0.0
  %711 = vmatprep.mubr.f32.mxu0 0.0
  %712 = vmatmul.mubr.f32.gmra.mxu0 %v120
  %v713 = vpop.f32.mrf.mxu0
  %v714 = vadd.f32 %v646, %v713
  %v715 = vpop.f32.mrf.mxu0
  %716 = vmatprep.mubr.f32.mxu0 0.0
  %717 = vmatmul.mubr.f32.gmra.mxu0 %v123
  %v718 = vpop.f32.mrf.mxu0
  %v719 = vadd.f32 %v646, %v718
  %v720 = vpop.f32.mrf.mxu0
  %721 = vdwg.mxu0
  %v722 = vmax.f32 %v714, 0.0
  %v723 = vmax.f32 %v719, 0.0
  %s724 = scalar_lea.vmem %s2, 512
  %v725 = vld [vmem:[%s724] sm:$0xff]
  %v726 = vld [vmem:[%s724 + $0x8] sm:$0xff]
  %v727 = vld [vmem:[%s724 + $0x10] sm:$0xff]
  %v728 = vld [vmem:[%s724 + $0x18] sm:$0xff]
  %v729 = vld [vmem:[%s724 + $0x20] sm:$0xff]
  %v730 = vld [vmem:[%s724 + $0x28] sm:$0xff]
  %v731 = vld [vmem:[%s724 + $0x30] sm:$0xff]
  %v732 = vld [vmem:[%s724 + $0x38] sm:$0xff]
  %v733 = vld [vmem:[%s724 + $0x40] sm:$0xff]
  %v734 = vld [vmem:[%s724 + $0x48] sm:$0xff]
  %v735 = vld [vmem:[%s724 + $0x50] sm:$0xff]
  %v736 = vld [vmem:[%s724 + $0x58] sm:$0xff]
  %v737 = vld [vmem:[%s724 + $0x60] sm:$0xff]
  %v738 = vld [vmem:[%s724 + $0x68] sm:$0xff]
  %v739 = vld [vmem:[%s724 + $0x70] sm:$0xff]
  %v740 = vld [vmem:[%s724 + $0x78] sm:$0xff]
  %741 = vmatprep.subr.mxu0 0.0
  %742 = vmatpush1.msra.mxu0 %v740
  %743 = vmatprep.subr.mxu0 0.0
  %744 = vmatpush1.msra.mxu0 %v739
  %745 = vmatprep.subr.mxu0 0.0
  %746 = vmatpush1.msra.mxu0 %v738
  %747 = vmatprep.subr.mxu0 0.0
  %748 = vmatpush1.msra.mxu0 %v737
  %749 = vmatprep.subr.mxu0 0.0
  %750 = vmatpush1.msra.mxu0 %v736
  %751 = vmatprep.subr.mxu0 0.0
  %752 = vmatpush1.msra.mxu0 %v735
  %753 = vmatprep.subr.mxu0 0.0
  %754 = vmatpush1.msra.mxu0 %v734
  %755 = vmatprep.subr.mxu0 0.0
  %756 = vmatpush1.msra.mxu0 %v733
  %757 = vmatprep.subr.mxu0 0.0
  %758 = vmatpush1.msra.mxu0 %v732
  %759 = vmatprep.subr.mxu0 0.0
  %760 = vmatpush1.msra.mxu0 %v731
  %761 = vmatprep.subr.mxu0 0.0
  %762 = vmatpush1.msra.mxu0 %v730
  %763 = vmatprep.subr.mxu0 0.0
  %764 = vmatpush1.msra.mxu0 %v729
  %765 = vmatprep.subr.mxu0 0.0
  %766 = vmatpush1.msra.mxu0 %v728
  %767 = vmatprep.subr.mxu0 0.0
  %768 = vmatpush1.msra.mxu0 %v727
  %769 = vmatprep.subr.mxu0 0.0
  %770 = vmatpush1.msra.mxu0 %v726
  %771 = vmatprep.subr.mxu0 0.0
  %772 = vmatpush1.msra.mxu0 %v725
  %773 = vmatprep.subr.mxu0 0.0
  %774 = vmatpush2.msra.mxu0 0.0
  %775 = vmatprep.subr.mxu0 0.0
  %776 = vmatpush2.msra.mxu0 0.0
  %777 = vmatprep.subr.mxu0 0.0
  %778 = vmatpush2.msra.mxu0 0.0
  %779 = vmatprep.subr.mxu0 0.0
  %780 = vmatpush2.msra.mxu0 0.0
  %781 = vmatprep.subr.mxu0 0.0
  %782 = vmatpush2.msra.mxu0 0.0
  %783 = vmatprep.subr.mxu0 0.0
  %784 = vmatpush2.msra.mxu0 0.0
  %785 = vmatprep.subr.mxu0 0.0
  %786 = vmatpush2.msra.mxu0 0.0
  %787 = vmatprep.subr.mxu0 0.0
  %788 = vmatpush2.msra.mxu0 0.0
  %789 = vmatprep.subr.mxu0 0.0
  %790 = vmatpush2.msra.mxu0 0.0
  %791 = vmatprep.subr.mxu0 0.0
  %792 = vmatpush2.msra.mxu0 0.0
  %793 = vmatprep.subr.mxu0 0.0
  %794 = vmatpush2.msra.mxu0 0.0
  %795 = vmatprep.subr.mxu0 0.0
  %796 = vmatpush2.msra.mxu0 0.0
  %797 = vmatprep.subr.mxu0 0.0
  %798 = vmatpush2.msra.mxu0 0.0
  %799 = vmatprep.subr.mxu0 0.0
  %800 = vmatpush2.msra.mxu0 0.0
  %801 = vmatprep.subr.mxu0 0.0
  %802 = vmatpush2.msra.mxu0 0.0
  %803 = vmatprep.subr.mxu0 0.0
  %804 = vmatpush2.msra.mxu0 0.0
  %805 = vmatprep.mubr.f32.mxu0 0.0
  %806 = vmatmul.mubr.f32.gmra.mxu0 %v722
  %v807 = vpop.f32.mrf.mxu0
  %v808 = vadd.f32 0.0, %v807
  %v809 = vpop.f32.mrf.mxu0
  %810 = vmatprep.mubr.f32.mxu0 0.0
  %811 = vmatmul.mubr.f32.gmra.mxu0 %v723
  %v812 = vpop.f32.mrf.mxu0
  %v813 = vadd.f32 0.0, %v812
  %v814 = vpop.f32.mrf.mxu0
  %815 = vdwg.mxu0
  %v816 = vld [vmem:[%s3 + $0x4] sm:$0x1]
  %v817 = vlaneseq
  %v818 = vshrl.u32 %v817, 7
  %v819 = vsub.s32 0, %v818
  %v820 = vrot.slane %v816, %v819
  %821 = vmatprep.subr.mxu0 0.0
  %822 = vmatpush1.msra.mxu0 0.0
  %823 = vmatprep.subr.mxu0 0.0
  %824 = vmatpush1.msra.mxu0 0.0
  %825 = vmatprep.subr.mxu0 0.0
  %826 = vmatpush1.msra.mxu0 0.0
  %827 = vmatprep.subr.mxu0 0.0
  %828 = vmatpush1.msra.mxu0 0.0
  %829 = vmatprep.subr.mxu0 0.0
  %830 = vmatpush1.msra.mxu0 0.0
  %831 = vmatprep.subr.mxu0 0.0
  %832 = vmatpush1.msra.mxu0 0.0
  %833 = vmatprep.subr.mxu0 0.0
  %834 = vmatpush1.msra.mxu0 0.0
  %835 = vmatprep.subr.mxu0 0.0
  %836 = vmatpush1.msra.mxu0 0.0
  %837 = vmatprep.subr.mxu0 0.0
  %838 = vmatpush1.msra.mxu0 0.0
  %839 = vmatprep.subr.mxu0 0.0
  %840 = vmatpush1.msra.mxu0 0.0
  %841 = vmatprep.subr.mxu0 0.0
  %842 = vmatpush1.msra.mxu0 0.0
  %843 = vmatprep.subr.mxu0 0.0
  %844 = vmatpush1.msra.mxu0 0.0
  %845 = vmatprep.subr.mxu0 0.0
  %846 = vmatpush1.msra.mxu0 0.0
  %847 = vmatprep.subr.mxu0 0.0
  %848 = vmatpush1.msra.mxu0 0.0
  %849 = vmatprep.subr.mxu0 0.0
  %850 = vmatpush1.msra.mxu0 %v813
  %851 = vmatprep.subr.mxu0 0.0
  %852 = vmatpush1.msra.mxu0 %v808
  %853 = vmatprep.subr.mxu0 0.0
  %854 = vmatpush2.msra.mxu0 0.0
  %855 = vmatprep.subr.mxu0 0.0
  %856 = vmatpush2.msra.mxu0 0.0
  %857 = vmatprep.subr.mxu0 0.0
  %858 = vmatpush2.msra.mxu0 0.0
  %859 = vmatprep.subr.mxu0 0.0
  %860 = vmatpush2.msra.mxu0 0.0
  %861 = vmatprep.subr.mxu0 0.0
  %862 = vmatpush2.msra.mxu0 0.0
  %863 = vmatprep.subr.mxu0 0.0
  %864 = vmatpush2.msra.mxu0 0.0
  %865 = vmatprep.subr.mxu0 0.0
  %866 = vmatpush2.msra.mxu0 0.0
  %867 = vmatprep.subr.mxu0 0.0
  %868 = vmatpush2.msra.mxu0 0.0
  %869 = vmatprep.subr.mxu0 0.0
  %870 = vmatpush2.msra.mxu0 0.0
  %871 = vmatprep.subr.mxu0 0.0
  %872 = vmatpush2.msra.mxu0 0.0
  %873 = vmatprep.subr.mxu0 0.0
  %874 = vmatpush2.msra.mxu0 0.0
  %875 = vmatprep.subr.mxu0 0.0
  %876 = vmatpush2.msra.mxu0 0.0
  %877 = vmatprep.subr.mxu0 0.0
  %878 = vmatpush2.msra.mxu0 0.0
  %879 = vmatprep.subr.mxu0 0.0
  %880 = vmatpush2.msra.mxu0 0.0
  %881 = vmatprep.subr.mxu0 0.0
  %882 = vmatpush2.msra.mxu0 0.0
  %883 = vmatprep.subr.mxu0 0.0
  %884 = vmatpush2.msra.mxu0 0.0
  %885 = vmatprep.mubr.f32.mxu0 0.0
  %886 = vmatmul.mubr.f32.gmra.mxu0 %v120
  %v887 = vpop.f32.mrf.mxu0
  %v888 = vadd.f32 %v820, %v887
  %v889 = vpop.f32.mrf.mxu0
  %890 = vmatprep.mubr.f32.mxu0 0.0
  %891 = vmatmul.mubr.f32.gmra.mxu0 %v123
  %v892 = vpop.f32.mrf.mxu0
  %v893 = vadd.f32 %v820, %v892
  %v894 = vpop.f32.mrf.mxu0
  %895 = vdwg.mxu0
  %v896 = vmax.f32 %v888, 0.0
  %v897 = vmax.f32 %v893, 0.0
  %v899 = vsel %vm118, %v19, 0
  %901 = vmatprep.subr.mxu0 0.0
  %902 = vmatpush1.msra.mxu0 0.0
  %903 = vmatprep.subr.mxu0 0.0
  %904 = vmatpush1.msra.mxu0 0.0
  %905 = vmatprep.subr.mxu0 0.0
  %906 = vmatpush1.msra.mxu0 0.0
  %907 = vmatprep.subr.mxu0 0.0
  %908 = vmatpush1.msra.mxu0 0.0
  %909 = vmatprep.subr.mxu0 0.0
  %910 = vmatpush1.msra.mxu0 0.0
  %911 = vmatprep.subr.mxu0 0.0
  %912 = vmatpush1.msra.mxu0 0.0
  %913 = vmatprep.subr.mxu0 0.0
  %914 = vmatpush1.msra.mxu0 0.0
  %915 = vmatprep.subr.mxu0 0.0
  %916 = vmatpush1.msra.mxu0 0.0
  %917 = vmatprep.subr.mxu0 0.0
  %918 = vmatpush1.msra.mxu0 0.0
  %919 = vmatprep.subr.mxu0 0.0
  %920 = vmatpush1.msra.mxu0 0.0
  %921 = vmatprep.subr.mxu0 0.0
  %922 = vmatpush1.msra.mxu0 0.0
  %923 = vmatprep.subr.mxu0 0.0
  %924 = vmatpush1.msra.mxu0 0.0
  %925 = vmatprep.subr.mxu0 0.0
  %926 = vmatpush1.msra.mxu0 0.0
  %927 = vmatprep.subr.mxu0 0.0
  %928 = vmatpush1.msra.mxu0 0.0
  %929 = vmatprep.subr.mxu0 0.0
  %930 = vmatpush1.msra.mxu0 %v897
  %931 = vmatprep.subr.mxu0 0.0
  %932 = vmatpush1.msra.mxu0 %v896
  %933 = vmatprep.subr.mxu0 0.0
  %934 = vmatpush2.msra.mxu0 0.0
  %935 = vmatprep.subr.mxu0 0.0
  %936 = vmatpush2.msra.mxu0 0.0
  %937 = vmatprep.subr.mxu0 0.0
  %938 = vmatpush2.msra.mxu0 0.0
  %939 = vmatprep.subr.mxu0 0.0
  %940 = vmatpush2.msra.mxu0 0.0
  %941 = vmatprep.subr.mxu0 0.0
  %942 = vmatpush2.msra.mxu0 0.0
  %943 = vmatprep.subr.mxu0 0.0
  %944 = vmatpush2.msra.mxu0 0.0
  %945 = vmatprep.subr.mxu0 0.0
  %946 = vmatpush2.msra.mxu0 0.0
  %947 = vmatprep.subr.mxu0 0.0
  %948 = vmatpush2.msra.mxu0 0.0
  %949 = vmatprep.subr.mxu0 0.0
  %950 = vmatpush2.msra.mxu0 0.0
  %951 = vmatprep.subr.mxu0 0.0
  %952 = vmatpush2.msra.mxu0 0.0
  %953 = vmatprep.subr.mxu0 0.0
  %954 = vmatpush2.msra.mxu0 0.0
  %955 = vmatprep.subr.mxu0 0.0
  %956 = vmatpush2.msra.mxu0 0.0
  %957 = vmatprep.subr.mxu0 0.0
  %958 = vmatpush2.msra.mxu0 0.0
  %959 = vmatprep.subr.mxu0 0.0
  %960 = vmatpush2.msra.mxu0 0.0
  %961 = vmatprep.subr.mxu0 0.0
  %962 = vmatpush2.msra.mxu0 0.0
  %963 = vmatprep.subr.mxu0 0.0
  %964 = vmatpush2.msra.mxu0 0.0
  %965 = vmatprep.mubr.f32.mxu0 0.0
  %966 = vmatmul.mubr.f32.gmra.mxu0 %v899
  %v967 = vpop.f32.mrf.mxu0
  %v968 = vadd.f32 0.0, %v967
  %v969 = vpop.f32.mrf.mxu0
  %970 = vdwg.mxu0
  %s971 = scalar_lea.vmem %s2, 640
  %v972 = vld [vmem:[%s971] sm:$0xff]
  %v973 = vld [vmem:[%s971 + $0x8] sm:$0xff]
  %v974 = vld [vmem:[%s971 + $0x10] sm:$0xff]
  %v975 = vld [vmem:[%s971 + $0x18] sm:$0xff]
  %v976 = vld [vmem:[%s971 + $0x20] sm:$0xff]
  %v977 = vld [vmem:[%s971 + $0x28] sm:$0xff]
  %v978 = vld [vmem:[%s971 + $0x30] sm:$0xff]
  %v979 = vld [vmem:[%s971 + $0x38] sm:$0xff]
  %v980 = vld [vmem:[%s971 + $0x40] sm:$0xff]
  %v981 = vld [vmem:[%s971 + $0x48] sm:$0xff]
  %v982 = vld [vmem:[%s971 + $0x50] sm:$0xff]
  %v983 = vld [vmem:[%s971 + $0x58] sm:$0xff]
  %v984 = vld [vmem:[%s971 + $0x60] sm:$0xff]
  %v985 = vld [vmem:[%s971 + $0x68] sm:$0xff]
  %v986 = vld [vmem:[%s971 + $0x70] sm:$0xff]
  %v987 = vld [vmem:[%s971 + $0x78] sm:$0xff]
  %v988 = vld [vmem:[%s3 + $0x5] sm:$0x1]
  %v989 = vlaneseq
  %v990 = vshrl.u32 %v989, 7
  %v991 = vsub.s32 0, %v990
  %v992 = vrot.slane %v988, %v991
  %993 = vmatprep.subr.mxu0 0.0
  %994 = vmatpush1.msra.mxu0 %v987
  %995 = vmatprep.subr.mxu0 0.0
  %996 = vmatpush1.msra.mxu0 %v986
  %997 = vmatprep.subr.mxu0 0.0
  %998 = vmatpush1.msra.mxu0 %v985
  %999 = vmatprep.subr.mxu0 0.0
  %1000 = vmatpush1.msra.mxu0 %v984
  %1001 = vmatprep.subr.mxu0 0.0
  %1002 = vmatpush1.msra.mxu0 %v983
  %1003 = vmatprep.subr.mxu0 0.0
  %1004 = vmatpush1.msra.mxu0 %v982
  %1005 = vmatprep.subr.mxu0 0.0
  %1006 = vmatpush1.msra.mxu0 %v981
  %1007 = vmatprep.subr.mxu0 0.0
  %1008 = vmatpush1.msra.mxu0 %v980
  %1009 = vmatprep.subr.mxu0 0.0
  %1010 = vmatpush1.msra.mxu0 %v979
  %1011 = vmatprep.subr.mxu0 0.0
  %1012 = vmatpush1.msra.mxu0 %v978
  %1013 = vmatprep.subr.mxu0 0.0
  %1014 = vmatpush1.msra.mxu0 %v977
  %1015 = vmatprep.subr.mxu0 0.0
  %1016 = vmatpush1.msra.mxu0 %v976
  %1017 = vmatprep.subr.mxu0 0.0
  %1018 = vmatpush1.msra.mxu0 %v975
  %1019 = vmatprep.subr.mxu0 0.0
  %1020 = vmatpush1.msra.mxu0 %v974
  %1021 = vmatprep.subr.mxu0 0.0
  %1022 = vmatpush1.msra.mxu0 %v973
  %1023 = vmatprep.subr.mxu0 0.0
  %1024 = vmatpush1.msra.mxu0 %v972
  %1025 = vmatprep.subr.mxu0 0.0
  %1026 = vmatpush2.msra.mxu0 0.0
  %1027 = vmatprep.subr.mxu0 0.0
  %1028 = vmatpush2.msra.mxu0 0.0
  %1029 = vmatprep.subr.mxu0 0.0
  %1030 = vmatpush2.msra.mxu0 0.0
  %1031 = vmatprep.subr.mxu0 0.0
  %1032 = vmatpush2.msra.mxu0 0.0
  %1033 = vmatprep.subr.mxu0 0.0
  %1034 = vmatpush2.msra.mxu0 0.0
  %1035 = vmatprep.subr.mxu0 0.0
  %1036 = vmatpush2.msra.mxu0 0.0
  %1037 = vmatprep.subr.mxu0 0.0
  %1038 = vmatpush2.msra.mxu0 0.0
  %1039 = vmatprep.subr.mxu0 0.0
  %1040 = vmatpush2.msra.mxu0 0.0
  %1041 = vmatprep.subr.mxu0 0.0
  %1042 = vmatpush2.msra.mxu0 0.0
  %1043 = vmatprep.subr.mxu0 0.0
  %1044 = vmatpush2.msra.mxu0 0.0
  %1045 = vmatprep.subr.mxu0 0.0
  %1046 = vmatpush2.msra.mxu0 0.0
  %1047 = vmatprep.subr.mxu0 0.0
  %1048 = vmatpush2.msra.mxu0 0.0
  %1049 = vmatprep.subr.mxu0 0.0
  %1050 = vmatpush2.msra.mxu0 0.0
  %1051 = vmatprep.subr.mxu0 0.0
  %1052 = vmatpush2.msra.mxu0 0.0
  %1053 = vmatprep.subr.mxu0 0.0
  %1054 = vmatpush2.msra.mxu0 0.0
  %1055 = vmatprep.subr.mxu0 0.0
  %1056 = vmatpush2.msra.mxu0 0.0
  %1057 = vmatprep.mubr.f32.mxu0 0.0
  %1058 = vmatmul.mubr.f32.gmra.mxu0 %v968
  %v1059 = vpop.f32.mrf.mxu0
  %v1060 = vadd.f32 %v992, %v1059
  %v1061 = vpop.f32.mrf.mxu0
  %1062 = vdwg.mxu0
  %v1063 = vmax.f32 %v1060, 0.0
  %s1064 = scalar_lea.vmem %s2, 768
  %v1065 = vld [vmem:[%s1064] sm:$0xff]
  %v1066 = vld [vmem:[%s1064 + $0x8] sm:$0xff]
  %v1067 = vld [vmem:[%s1064 + $0x10] sm:$0xff]
  %v1068 = vld [vmem:[%s1064 + $0x18] sm:$0xff]
  %v1069 = vld [vmem:[%s1064 + $0x20] sm:$0xff]
  %v1070 = vld [vmem:[%s1064 + $0x28] sm:$0xff]
  %v1071 = vld [vmem:[%s1064 + $0x30] sm:$0xff]
  %v1072 = vld [vmem:[%s1064 + $0x38] sm:$0xff]
  %v1073 = vld [vmem:[%s1064 + $0x40] sm:$0xff]
  %v1074 = vld [vmem:[%s1064 + $0x48] sm:$0xff]
  %v1075 = vld [vmem:[%s1064 + $0x50] sm:$0xff]
  %v1076 = vld [vmem:[%s1064 + $0x58] sm:$0xff]
  %v1077 = vld [vmem:[%s1064 + $0x60] sm:$0xff]
  %v1078 = vld [vmem:[%s1064 + $0x68] sm:$0xff]
  %v1079 = vld [vmem:[%s1064 + $0x70] sm:$0xff]
  %v1080 = vld [vmem:[%s1064 + $0x78] sm:$0xff]
  %v1081 = vld [vmem:[%s3 + $0x6] sm:$0x1]
  %v1082 = vlaneseq
  %v1083 = vshrl.u32 %v1082, 7
  %v1084 = vsub.s32 0, %v1083
  %v1085 = vrot.slane %v1081, %v1084
  %1086 = vmatprep.subr.mxu0 0.0
  %1087 = vmatpush1.msra.mxu0 %v1080
  %1088 = vmatprep.subr.mxu0 0.0
  %1089 = vmatpush1.msra.mxu0 %v1079
  %1090 = vmatprep.subr.mxu0 0.0
  %1091 = vmatpush1.msra.mxu0 %v1078
  %1092 = vmatprep.subr.mxu0 0.0
  %1093 = vmatpush1.msra.mxu0 %v1077
  %1094 = vmatprep.subr.mxu0 0.0
  %1095 = vmatpush1.msra.mxu0 %v1076
  %1096 = vmatprep.subr.mxu0 0.0
  %1097 = vmatpush1.msra.mxu0 %v1075
  %1098 = vmatprep.subr.mxu0 0.0
  %1099 = vmatpush1.msra.mxu0 %v1074
  %1100 = vmatprep.subr.mxu0 0.0
  %1101 = vmatpush1.msra.mxu0 %v1073
  %1102 = vmatprep.subr.mxu0 0.0
  %1103 = vmatpush1.msra.mxu0 %v1072
  %1104 = vmatprep.subr.mxu0 0.0
  %1105 = vmatpush1.msra.mxu0 %v1071
  %1106 = vmatprep.subr.mxu0 0.0
  %1107 = vmatpush1.msra.mxu0 %v1070
  %1108 = vmatprep.subr.mxu0 0.0
  %1109 = vmatpush1.msra.mxu0 %v1069
  %1110 = vmatprep.subr.mxu0 0.0
  %1111 = vmatpush1.msra.mxu0 %v1068
  %1112 = vmatprep.subr.mxu0 0.0
  %1113 = vmatpush1.msra.mxu0 %v1067
  %1114 = vmatprep.subr.mxu0 0.0
  %1115 = vmatpush1.msra.mxu0 %v1066
  %1116 = vmatprep.subr.mxu0 0.0
  %1117 = vmatpush1.msra.mxu0 %v1065
  %1118 = vmatprep.subr.mxu0 0.0
  %1119 = vmatpush2.msra.mxu0 0.0
  %1120 = vmatprep.subr.mxu0 0.0
  %1121 = vmatpush2.msra.mxu0 0.0
  %1122 = vmatprep.subr.mxu0 0.0
  %1123 = vmatpush2.msra.mxu0 0.0
  %1124 = vmatprep.subr.mxu0 0.0
  %1125 = vmatpush2.msra.mxu0 0.0
  %1126 = vmatprep.subr.mxu0 0.0
  %1127 = vmatpush2.msra.mxu0 0.0
  %1128 = vmatprep.subr.mxu0 0.0
  %1129 = vmatpush2.msra.mxu0 0.0
  %1130 = vmatprep.subr.mxu0 0.0
  %1131 = vmatpush2.msra.mxu0 0.0
  %1132 = vmatprep.subr.mxu0 0.0
  %1133 = vmatpush2.msra.mxu0 0.0
  %1134 = vmatprep.subr.mxu0 0.0
  %1135 = vmatpush2.msra.mxu0 0.0
  %1136 = vmatprep.subr.mxu0 0.0
  %1137 = vmatpush2.msra.mxu0 0.0
  %1138 = vmatprep.subr.mxu0 0.0
  %1139 = vmatpush2.msra.mxu0 0.0
  %1140 = vmatprep.subr.mxu0 0.0
  %1141 = vmatpush2.msra.mxu0 0.0
  %1142 = vmatprep.subr.mxu0 0.0
  %1143 = vmatpush2.msra.mxu0 0.0
  %1144 = vmatprep.subr.mxu0 0.0
  %1145 = vmatpush2.msra.mxu0 0.0
  %1146 = vmatprep.subr.mxu0 0.0
  %1147 = vmatpush2.msra.mxu0 0.0
  %1148 = vmatprep.subr.mxu0 0.0
  %1149 = vmatpush2.msra.mxu0 0.0
  %1150 = vmatprep.mubr.f32.mxu0 0.0
  %1151 = vmatmul.mubr.f32.gmra.mxu0 %v1063
  %v1152 = vpop.f32.mrf.mxu0
  %v1153 = vadd.f32 %v1085, %v1152
  %v1154 = vpop.f32.mrf.mxu0
  %1155 = vdwg.mxu0
  %1156 = vst [vmem:[%s4] sm:$0xff] %v1153
  // Predicated region
  $region18: #{gcn_forward.1} parent=0 // pred_check
    _
  $region19: #{gcn_forward.1} parent=0 // pred_check_branch
    %1158 = sbr.rel (0) target = $region21
  $region20: #{gcn_forward.1} parent=0 // pred_region
    _
  $region21: #{gcn_forward.1} parent=0 // pred_fallthru
    _
  // Predicated region
  $region22: #{gcn_forward.1} parent=0 // pred_check
    _
  $region23: #{gcn_forward.1} parent=0 // pred_check_branch
    %1160 = sbr.rel (0) target = $region25
  $region24: #{gcn_forward.1} parent=0 // pred_region
    _
  $region25: #{gcn_forward.1} parent=0 // pred_fallthru
    _

</llo_original>
